<compile_context>
chip_gen: v7x
topology: tpu7x:2x2x1
jax: 0.10.0
libtpu: 0.0.40
codegen_flags: <defaults>
</compile_context>

<pallas_src>
import functools

import jax
import jax.numpy as jnp
from jax.experimental import pallas as pl
from jax.experimental.pallas import tpu as pltpu


def _safe_loss_kernel(scores_ref, labels_ref, out_ref, *, bsz, block_rows):
    # scores_ref: (TB, 30) native dtype ; labels_ref: (TB, 1) ; out_ref: (TB, 1) f32
    scores = scores_ref[...].astype(jnp.float32)            # cast in-kernel (free under DMA)
    labels = labels_ref[...].astype(jnp.float32)            # (TB, 1)

    # weighted single lane-reduce:
    #   w = 1 for cols 0..14, (1 - label) for cols 15..29
    #   sum(w * scores) == label*s15 + (1-label)*s30
    lane = jax.lax.broadcasted_iota(jnp.int32, scores.shape, 1)       # (TB, 30)
    w = jnp.where(lane >= 15, 1.0 - labels, 1.0)                      # broadcast (TB,1)->(TB,30)
    sum_lambda_t = jnp.sum(scores * w, axis=-1, keepdims=True)        # (TB, 1)

    # gate the log term so labels==0 rows never produce NaN/inf
    second_term = jnp.where(
        labels > 0.0,
        jnp.log(jnp.exp(sum_lambda_t) - 1.0 + 1e-08),
        0.0,
    )
    loss = sum_lambda_t - second_term                                 # (TB, 1)

    # ragged tail: rows past the true batch size (only in the last block) may
    # hold undefined data -> force them to exactly 0 before the store.
    row = (pl.program_id(0) * block_rows
           + jax.lax.broadcasted_iota(jnp.int32, loss.shape, 0))
    out_ref[...] = jnp.where(row < bsz, loss, 0.0)


def _round_up(x, m):
    return ((x + m - 1) // m) * m


def safe_loss(scores, labels, reduction='mean'):
    """Pallas implementation of SAFELoss.forward.

    scores: (B, 30) float array (f32 or bf16; cast happens in-kernel)
    labels: (B,)    numeric / bool array
    """
    assert reduction in ('sum', 'mean', 'none')
    assert scores.ndim == 2
    bsz, time_steps = scores.shape
    assert time_steps == 30

    # labels are tiny (4 B/elem vs 120 B/elem of scores); only bools need a
    # wrapper cast (awkward VMEM layout), everything else is cast in-kernel.
    if labels.dtype == jnp.bool_:
        labels = labels.astype(jnp.float32)
    labels2d = labels.reshape(bsz, 1)                       # free metadata reshape

    # Row tile: big enough to amortize the ~0.35 us/step overhead, small enough
    # for v7x VMEM (lane-padded buffers), and >= 2 blocks so v7x's 2 TCs share
    # the "parallel" grid axis when B is large.
    cap = 8192
    tb = min(cap, _round_up(pl.cdiv(bsz, 2), 8))
    grid = (pl.cdiv(bsz, tb),)

    kernel = functools.partial(_safe_loss_kernel, bsz=bsz, block_rows=tb)

    per = pl.pallas_call(
        kernel,
        out_shape=jax.ShapeDtypeStruct((bsz, 1), jnp.float32),
        grid=grid,
        in_specs=[
            pl.BlockSpec((tb, 30), lambda i: (i, 0)),       # scores, native (B,30)
            pl.BlockSpec((tb, 1), lambda i: (i, 0)),        # labels
        ],
        out_specs=pl.BlockSpec((tb, 1), lambda i: (i, 0)),
        compiler_params=pltpu.CompilerParams(
            dimension_semantics=("parallel",),
            vmem_limit_bytes=40 * 1024 * 1024,
        ),
        cost_estimate=pl.CostEstimate(
            flops=33 * bsz,
            transcendentals=2 * bsz,
            bytes_accessed=bsz * (30 + 1 + 1) * 4,
        ),
    )(scores, labels2d)

    per = per[:, 0]                                         # (B,)
    if reduction == 'none':
        return per
    total = jnp.sum(per)
    if reduction == 'sum':
        return total
    return total / jnp.float32(bsz)


def _reference(scores, labels, reduction='mean'):
    labels = labels.astype(jnp.float32)
    scores = scores.astype(jnp.float32)
    s15 = scores[:, :15].sum(1)
    s30 = scores[:, :30].sum(1)
    sum_lambda_t = labels * s15 + (1.0 - labels) * s30
    second = jnp.where(labels > 0.0,
                       jnp.log(jnp.exp(sum_lambda_t) - 1.0 + 1e-08),
                       0.0)
    per = sum_lambda_t - second
    if reduction == 'sum':
        return per.sum()
    if reduction == 'mean':
        return per.mean()
    return per


if __name__ == "__main__":
    key = jax.random.PRNGKey(0)
    k1, k2, k3, k4 = jax.random.split(key, 4)

    # small shapes consistent with the module; positive scores keep the
    # labels==1 log term finite (same regime where PyTorch is well-defined)
    bsz, time_steps = 8, 30
    scores = jax.random.uniform(k1, (bsz, time_steps),
                                minval=0.05, maxval=0.3, dtype=jnp.float32)
    labels = (jax.random.uniform(k2, (bsz,)) > 0.5).astype(jnp.float32)

    out_mean = jax.block_until_ready(safe_loss(scores, labels, 'mean'))
    out_sum = jax.block_until_ready(safe_loss(scores, labels, 'sum'))
    out_none = jax.block_until_ready(safe_loss(scores, labels, 'none'))

    assert jnp.allclose(out_mean, _reference(scores, labels, 'mean'),
                        atol=1e-5, rtol=1e-5)
    assert jnp.allclose(out_sum, _reference(scores, labels, 'sum'),
                        atol=1e-5, rtol=1e-5)
    assert jnp.allclose(out_none, _reference(scores, labels, 'none'),
                        atol=1e-5, rtol=1e-5)

    # second case: B not a multiple of 8/128 -> exercises the ragged tail
    # (masked in-kernel, no wrapper pad) and the >=2-block grid split
    bsz2 = 200
    scores2 = jax.random.uniform(k3, (bsz2, time_steps),
                                 minval=0.05, maxval=0.3, dtype=jnp.float32)
    labels2 = (jax.random.uniform(k4, (bsz2,)) > 0.5).astype(jnp.float32)
    out2_mean = jax.block_until_ready(safe_loss(scores2, labels2, 'mean'))
    out2_none = jax.block_until_ready(safe_loss(scores2, labels2, 'none'))
    assert jnp.allclose(out2_mean, _reference(scores2, labels2, 'mean'),
                        atol=1e-5, rtol=1e-5)
    assert jnp.allclose(out2_none, _reference(scores2, labels2, 'none'),
                        atol=1e-5, rtol=1e-5)

    print("KERNEL_OK")
</pallas_src>

<mosaic_0001>
module attributes {stable_mosaic.version = 11 : i64} {
  func.func @_safe_loss_kernel(%arg0: i32, %arg1: memref<8x30xf32, #tpu.memory_space<vmem>>, %arg2: memref<8x1xf32, #tpu.memory_space<vmem>>, %arg3: memref<8x1xf32, #tpu.memory_space<vmem>>) attributes {dimension_semantics = [#tpu.dimension_semantics<parallel>], iteration_bounds = array<i64: 1>, scalar_prefetch = 0 : i64, scratch_operands = 0 : i64, tpu.core_type = #tpu.core_type<tc>, window_params = [{transform_indices = @transform_0, window_bounds = array<i64: 8, 30>}, {transform_indices = @transform_1, window_bounds = array<i64: 8, 1>}, {transform_indices = @transform_2, window_bounds = array<i64: 8, 1>}]} {
    %c0 = arith.constant 0 : index
    %c0_0 = arith.constant 0 : index
    %0 = vector.load %arg1[%c0, %c0_0] : memref<8x30xf32, #tpu.memory_space<vmem>>, vector<8x30xf32>
    %c0_1 = arith.constant 0 : index
    %c0_2 = arith.constant 0 : index
    %1 = vector.load %arg2[%c0_1, %c0_2] : memref<8x1xf32, #tpu.memory_space<vmem>>, vector<8x1xf32>
    %2 = tpu.iota {dimensions = array<i32: 1>} : vector<8x30xi32>
    %c15_i32 = arith.constant 15 : i32
    %3 = vector.broadcast %c15_i32 : i32 to vector<8x30xi32>
    %4 = arith.cmpi sge, %2, %3 : vector<8x30xi32>
    %cst = arith.constant 1.000000e+00 : f32
    %5 = vector.broadcast %cst : f32 to vector<8x1xf32>
    %6 = arith.subf %5, %1 : vector<8x1xf32>
    %cst_3 = arith.constant 1.000000e+00 : f32
    %7 = vector.shape_cast %6 : vector<8x1xf32> to vector<8x1xf32>
    %8 = vector.broadcast %7 : vector<8x1xf32> to vector<8x30xf32>
    %9 = vector.broadcast %cst_3 : f32 to vector<8x30xf32>
    %10 = arith.select %4, %8, %9 : vector<8x30xi1>, vector<8x30xf32>
    %11 = arith.mulf %0, %10 : vector<8x30xf32>
    %cst_4 = arith.constant dense<0.000000e+00> : vector<8xf32>
    %12 = vector.multi_reduction <add>, %11, %cst_4 [1] : vector<8x30xf32> to vector<8xf32>
    %13 = vector.shape_cast %12 : vector<8xf32> to vector<8x1xf32>
    %cst_5 = arith.constant 0.000000e+00 : f32
    %14 = vector.broadcast %cst_5 : f32 to vector<8x1xf32>
    %15 = arith.cmpf ogt, %1, %14 : vector<8x1xf32>
    %16 = math.exp %13 : vector<8x1xf32>
    %cst_6 = arith.constant 1.000000e+00 : f32
    %17 = vector.broadcast %cst_6 : f32 to vector<8x1xf32>
    %18 = arith.subf %16, %17 : vector<8x1xf32>
    %cst_7 = arith.constant 9.99999993E-9 : f32
    %19 = vector.broadcast %cst_7 : f32 to vector<8x1xf32>
    %20 = arith.addf %18, %19 : vector<8x1xf32>
    %21 = math.log %20 : vector<8x1xf32>
    %cst_8 = arith.constant 0.000000e+00 : f32
    %22 = vector.broadcast %cst_8 : f32 to vector<8x1xf32>
    %23 = arith.select %15, %21, %22 : vector<8x1xi1>, vector<8x1xf32>
    %24 = arith.subf %13, %23 : vector<8x1xf32>
    %c8_i32 = arith.constant 8 : i32
    %25 = arith.muli %arg0, %c8_i32 : i32
    %26 = tpu.iota {dimensions = array<i32: 0>} : vector<8x1xi32>
    %27 = vector.broadcast %25 : i32 to vector<8x1xi32>
    %28 = arith.addi %27, %26 : vector<8x1xi32>
    %c8_i32_9 = arith.constant 8 : i32
    %29 = vector.broadcast %c8_i32_9 : i32 to vector<8x1xi32>
    %30 = arith.cmpi slt, %28, %29 : vector<8x1xi32>
    %cst_10 = arith.constant 0.000000e+00 : f32
    %31 = vector.broadcast %cst_10 : f32 to vector<8x1xf32>
    %32 = arith.select %30, %24, %31 : vector<8x1xi1>, vector<8x1xf32>
    %c0_11 = arith.constant 0 : index
    %c0_12 = arith.constant 0 : index
    %33 = vector.load %arg3[%c0_11, %c0_12] : memref<8x1xf32, #tpu.memory_space<vmem>>, vector<8x1xf32>
    tpu.vector_store %arg3[%c0_11, %c0_12], %32 {strides = array<i32>} : memref<8x1xf32, #tpu.memory_space<vmem>>, vector<8x1xf32>,
    return
  }
  func.func @transform_0(%arg0: i32) -> (i32, i32) {
    %c0_i32 = arith.constant 0 : i32
    %c0_i32_0 = arith.constant 0 : i32
    return %arg0, %c0_i32 : i32, i32
  }
  func.func @transform_1(%arg0: i32) -> (i32, i32) {
    %c0_i32 = arith.constant 0 : i32
    %c0_i32_0 = arith.constant 0 : i32
    return %arg0, %c0_i32 : i32, i32
  }
  func.func @transform_2(%arg0: i32) -> (i32, i32) {
    %c0_i32 = arith.constant 0 : i32
    %c0_i32_0 = arith.constant 0 : i32
    return %arg0, %c0_i32 : i32, i32
  }
}

</mosaic_0001>

<llo_original>
// kernel: tpu_custom_call.1
$region0: #{tpu_custom_call.1}
  #allocation0 [shape = 'u32[]', space=smem, size = 0x4, offset = 0x4, fixed_abs, tag = 'smem constant byte address 0x4 - core index']
  #allocation1 [shape = 'u32[144,128]{1,0:T(1,128)}', space=vmem, size = 0x12000, scoped, tag = 'internal scratch']
  %s0 = inlined_call_operand.vmem [shape: f32[8,30], index: 0, kind: input, shape index: {}]
  %s1 = inlined_call_operand.vmem [shape: f32[8,1], index: 1, kind: input, shape index: {}]
  %s2 = inlined_call_operand.vmem [shape: f32[8,1], index: 2, kind: output, shape index: {}]
  %s3 = sld [smem:[#allocation0]]
  $region18: #{tpu_custom_call.1} parent=0
    _
  %s5 = ssub.s32 1, %s3
  %s6 = scalar_select 0, %s5, %s3
  // Predicated region
  $region2: #{tpu_custom_call.1} parent=0 // pred_check
    _
  $region3: #{tpu_custom_call.1} parent=0 // pred_check_branch
    %8 = sbr.rel (0) target = $region5
  $region4: #{tpu_custom_call.1} parent=0 // pred_region
    _
  $region5: #{tpu_custom_call.1} parent=0 // pred_fallthru
    _
  // Predicated region
  $region6: #{tpu_custom_call.1} parent=0 // pred_check
    _
  $region7: #{tpu_custom_call.1} parent=0 // pred_check_branch
    %10 = sbr.rel (0) target = $region9
  $region8: #{tpu_custom_call.1} parent=0 // pred_region
    _
  $region9: #{tpu_custom_call.1} parent=0 // pred_fallthru
    _
  %v11 = vld [vmem:[%s0] sm:$0xff]
  %v12 = vld [vmem:[%s1] sm:$0xff]
  %v13 = vlaneseq
  %v14 = vand.u32 %v13, 127
  %vm15 = vcmp.ge.s32.totalorder %v14, 15
  %v16 = vsub.f32 1.0, %v12
  %18 = vset.pattern.permute.xlu0 0
  %19 = vperm.xlu0 %18, %v16
  %v20 = vpop.permute.xlu0 %19
  %v22 = vsel %vm15, %v20, 1.0
  %v23 = vmul.f32 %v11, %v22
  %vm24 = vcmask 244736
  %v25 = vsel %vm24, %v23, 0.0
  %26 = vadd.xlane.f32.xlu0 %v25
  %v27 = vpop.xlane.xlu0 %26
  %vm28 = vcmp.gt.f32.partialorder %v12, 0.0
  %v29 = vmul.f32 %v27, 1.442695
  %v30 = vpow.pop %v29
  %v31 = vsub.f32 %v30, 1.0
  %v32 = vadd.f32 %v31, 1e-08
  %v33 = vlog2.pop %v32
  %v34 = vmul.f32 %v33, 0.6931472
  %v35 = vsel %vm28, %v34, 0.0
  %v36 = vsub.f32 %v27, %v35
  %s37 = smul.u32 0, 8
  %v38 = vlaneseq
  %v39 = vshrl.u32 %v38, 7
  %v40 = vstv %s37
  %v41 = vadd.s32 %v40, %v39
  %vm42 = vcmp.lt.s32.totalorder %v41, 8
  %v43 = vsel %vm42, %v36, 0.0
  %vm44 = vcmask 7168
  %45 = vst.msk [vmem:[%s2] sm:$0xff] %vm44, %v43
  // Predicated region
  $region10: #{tpu_custom_call.1} parent=0 // pred_check
    _
  $region11: #{tpu_custom_call.1} parent=0 // pred_check_branch
    %47 = sbr.rel (0) target = $region13
  $region12: #{tpu_custom_call.1} parent=0 // pred_region
    _
  $region13: #{tpu_custom_call.1} parent=0 // pred_fallthru
    _
  // Predicated region
  $region14: #{tpu_custom_call.1} parent=0 // pred_check
    _
  $region15: #{tpu_custom_call.1} parent=0 // pred_check_branch
    %49 = sbr.rel (0) target = $region17
  $region16: #{tpu_custom_call.1} parent=0 // pred_region
    _
  $region17: #{tpu_custom_call.1} parent=0 // pred_fallthru
    _

</llo_original>
